<compile_context>
chip_gen: v7x
topology: tpu7x:2x2x1
jax: 0.10.0
libtpu: 0.0.40
codegen_flags: <defaults>
</compile_context>

<pallas_src>
import functools

import jax
import jax.numpy as jnp
from jax.experimental import pallas as pl
from jax.experimental.pallas import tpu as pltpu

_N_TERMS = 7                    # number of global sums produced by the kernel
_SUBLANE = 8                    # f32 sublane tile
_N_CORES = 2                    # v7x has 2 TensorCores; extra axis is free elsewhere
_VMEM_INPUT_BUDGET = 28 << 20   # 7 inputs x 2 buffers, fits v7x 64 MiB VMEM
_VMEM_LIMIT_BYTES = 48 << 20


def _loss_sums_kernel(prob_ref, binary_ref, thresh_ref, gt_ref, mask_ref,
                      tmap_ref, tmask_ref, out_ref, *,
                      rows, row_tile, steps, lane, need_mask):
    i = pl.program_id(1)

    # Output block is resident across the reduction axis: zero it once per core.
    @pl.when(i == 0)
    def _():
        out_ref[...] = jnp.zeros_like(out_ref)

    prob = prob_ref[...].astype(jnp.float32)
    binary = binary_ref[...].astype(jnp.float32)
    thresh = thresh_ref[...].astype(jnp.float32)
    gt = gt_ref[...].astype(jnp.float32)
    mask = mask_ref[...].astype(jnp.float32)
    tmap = tmap_ref[...].astype(jnp.float32)
    tmask = tmask_ref[...].astype(jnp.float32)

    pm = prob * mask
    bm = binary * mask
    terms = (
        pm * gt,                          # 0: dice intersection (prob)
        pm,                               # 1: sum(prob * mask)
        gt * mask,                        # 2: sum(gt * mask)
        bm * gt,                          # 3: dice intersection (binary)
        bm,                               # 4: sum(binary * mask)
        jnp.abs(thresh - tmap) * tmask,   # 5: L1 numerator
        tmask,                            # 6: L1 denominator
    )

    if need_mask:
        # Zero contributions from rows past the end of the data (ragged last
        # block) and from duplicated blocks (odd block count split over cores).
        c = pl.program_id(0)
        g = c * steps + i                       # un-clamped global block id
        valid_rows = rows - g * row_tile
        rowid = jax.lax.broadcasted_iota(jnp.int32, (row_tile, lane), 0)
        valid = rowid < valid_rows
        terms = tuple(jnp.where(valid, t, 0.0) for t in terms)

    for k, t in enumerate(terms):
        # Fold sublane groups of 8 with pure VPU adds; the single cross-lane
        # reduce of the (8, lane) partials happens once, outside the kernel.
        out_ref[0, k] += t.reshape(row_tile // _SUBLANE, _SUBLANE, lane).sum(axis=0)


def _round_up(x, m):
    return -(-x // m) * m


def _choose_layout(total, itemsizes):
    """Pick (lane, padded_total, sub_mult, budget_rows) for the flattened slabs."""
    # Minimum sublane multiple for the narrowest dtype (f32:8, bf16:16, int8:32).
    sub_mult = max(8, max(32 // s for s in itemsizes))
    bytes_per_px = sum(itemsizes)

    if total % 128 != 0 or total < sub_mult * 128:
        # Rare / tiny inputs: minimally pad the flattened stream (zeros are
        # inert: every summed term carries a mask factor).
        lane = 128
        padded_total = _round_up(max(total, sub_mult * 128), 128)
    else:
        lane = 128
        for cand in (512, 256):
            if total % cand == 0 and total // cand >= sub_mult:
                lane = cand
                break
        padded_total = total

    budget_rows = _VMEM_INPUT_BUDGET // (2 * lane * bytes_per_px)
    budget_rows = max(sub_mult, (budget_rows // sub_mult) * sub_mult)
    return lane, padded_total, sub_mult, budget_rows


def _choose_tiling(rows, sub_mult, budget_rows, n_cores):
    """Pick (row_tile, nblocks, cores, steps, need_mask)."""
    cap = max(sub_mult, min(budget_rows, (rows // sub_mult) * sub_mult))
    best = best_split = 0
    for d in range(sub_mult, cap + 1, sub_mult):
        if rows % d == 0:
            best = d
            if (rows // d) % n_cores == 0:
                best_split = d
    if best_split * 2 >= cap:      # exact tiling AND an even split over cores
        row_tile = best_split
    elif best * 2 >= cap:          # exact tiling (dup block masked if count odd)
        row_tile = best
    else:                          # ragged last block, masked in-kernel
        row_tile = cap
    nblocks = -(-rows // row_tile)
    cores = min(n_cores, nblocks)
    steps = -(-nblocks // cores)
    need_mask = (rows != nblocks * row_tile) or (nblocks != cores * steps)
    return row_tile, nblocks, cores, steps, need_mask


def l1_dice_loss(pred, target, eps=1e-6, l1_scale=10.0):
    """pred: dict(prob, binary, thresh) each (N,1,H,W);
       target: dict(gt (N,1,H,W), mask, thresh_map, thresh_mask each (N,H,W))."""
    operands = [
        pred['prob'][:, 0], pred['binary'][:, 0], pred['thresh'][:, 0],
        target['gt'][:, 0], target['mask'], target['thresh_map'],
        target['thresh_mask'],
    ]
    total = int(operands[0].size)
    itemsizes = [x.dtype.itemsize for x in operands]

    lane, padded_total, sub_mult, budget_rows = _choose_layout(total, itemsizes)
    rows = padded_total // lane
    row_tile, nblocks, cores, steps, need_mask = _choose_tiling(
        rows, sub_mult, budget_rows, _N_CORES)

    def to_slab(x):
        flat = x.reshape(-1)
        if padded_total != total:
            flat = jnp.pad(flat, (0, padded_total - total))
        return flat.reshape(rows, lane)

    slabs = [to_slab(x) for x in operands]

    in_spec = pl.BlockSpec(
        (row_tile, lane),
        lambda c, i: (jnp.minimum(c * steps + i, nblocks - 1), 0))
    out_spec = pl.BlockSpec((1, _N_TERMS, _SUBLANE, lane),
                            lambda c, i: (c, 0, 0, 0))

    kernel = functools.partial(
        _loss_sums_kernel, rows=rows, row_tile=row_tile, steps=steps,
        lane=lane, need_mask=need_mask)

    partials = pl.pallas_call(
        kernel,
        out_shape=jax.ShapeDtypeStruct(
            (cores, _N_TERMS, _SUBLANE, lane), jnp.float32),
        grid_spec=pltpu.PrefetchScalarGridSpec(
            num_scalar_prefetch=0,
            grid=(cores, steps),
            in_specs=[in_spec] * len(slabs),
            out_specs=out_spec,
        ),
        compiler_params=pltpu.CompilerParams(
            dimension_semantics=("parallel", "arbitrary"),
            vmem_limit_bytes=_VMEM_LIMIT_BYTES),
    )(*slabs)

    # Tiny epilogue in plain JAX: one cross-lane reduce + the scalar ratios.
    s = jnp.sum(partials, axis=(0, 2, 3))
    inter_prob, prob_m, gt_m = s[0], s[1], s[2]
    inter_bin, bin_m = s[3], s[4]
    l1_num, tmask_sum = s[5], s[6]

    main_loss = 1.0 - 2.0 * inter_prob / (prob_m + gt_m + eps)
    binary_loss = 1.0 - 2.0 * inter_bin / (bin_m + gt_m + eps)
    dice_loss = main_loss + binary_loss
    # MaskL1Loss returns 0 when the mask is entirely empty.
    l1_loss = jnp.where(tmask_sum == 0, jnp.float32(0.0),
                        l1_num / jnp.where(tmask_sum == 0, 1.0, tmask_sum))
    loss = dice_loss + l1_scale * l1_loss
    metrics = dict(main_loss=main_loss, binary_loss=binary_loss, l1_loss=l1_loss)
    return loss, metrics


def _reference(pred, target, eps=1e-6, l1_scale=10.0):
    f32 = lambda x: x.astype(jnp.float32)
    prob = f32(pred['prob'][:, 0])
    binary = f32(pred['binary'][:, 0])
    thresh = f32(pred['thresh'][:, 0])
    gt = f32(target['gt'][:, 0])
    mask = f32(target['mask'])
    tmap = f32(target['thresh_map'])
    tmask = f32(target['thresh_mask'])

    def dice(p):
        inter = jnp.sum(p * gt * mask)
        union = jnp.sum(p * mask) + jnp.sum(gt * mask) + eps
        return 1.0 - 2.0 * inter / union

    dice_loss = dice(prob) + dice(binary)
    msum = jnp.sum(tmask)
    l1 = jnp.where(msum == 0, 0.0,
                   jnp.sum(jnp.abs(thresh - tmap) * tmask)
                   / jnp.where(msum == 0, 1.0, msum))
    return dice_loss + l1_scale * l1


if __name__ == "__main__":
    def make_inputs(key, n, h, w, dtype=jnp.float32):
        ks = jax.random.split(key, 7)
        pred = dict(
            prob=jax.nn.sigmoid(jax.random.normal(ks[0], (n, 1, h, w))).astype(dtype),
            binary=jax.nn.sigmoid(jax.random.normal(ks[1], (n, 1, h, w))).astype(dtype),
            thresh=jax.nn.sigmoid(jax.random.normal(ks[2], (n, 1, h, w))).astype(dtype),
        )
        target = dict(
            gt=(jax.random.uniform(ks[3], (n, 1, h, w)) > 0.5).astype(dtype),
            mask=(jax.random.uniform(ks[4], (n, h, w)) > 0.2).astype(dtype),
            thresh_map=jax.random.uniform(ks[5], (n, h, w)).astype(dtype),
            thresh_mask=(jax.random.uniform(ks[6], (n, h, w)) > 0.3).astype(dtype),
        )
        return pred, target

    cases = [
        ((2, 16, 16), jnp.float32),   # tiny: padded to one exact block, 1 core
        ((2, 64, 64), jnp.float32),   # exact 2-core split, no masking
        ((2, 48, 80), jnp.float32),   # ragged last row block -> in-kernel mask
        ((2, 64, 64), jnp.bfloat16),  # narrow input dtype, f32 accumulation
    ]
    keys = jax.random.split(jax.random.PRNGKey(0), len(cases))
    for k_, ((n, h, w), dtype) in zip(keys, cases):
        pred, target = make_inputs(k_, n, h, w, dtype)
        loss, metrics = jax.block_until_ready(l1_dice_loss(pred, target))
        ref = jax.block_until_ready(_reference(pred, target))
        assert jnp.allclose(loss, ref, rtol=1e-4, atol=1e-5), (
            (n, h, w, str(dtype)), loss, ref)
    print("KERNEL_OK")
</pallas_src>

<mosaic_0001>
module attributes {stable_mosaic.version = 11 : i64} {
  func.func @_loss_sums_kernel(%arg0: i32, %arg1: i32, %arg2: memref<8x128xf32, #tpu.memory_space<vmem>>, %arg3: memref<8x128xf32, #tpu.memory_space<vmem>>, %arg4: memref<8x128xf32, #tpu.memory_space<vmem>>, %arg5: memref<8x128xf32, #tpu.memory_space<vmem>>, %arg6: memref<8x128xf32, #tpu.memory_space<vmem>>, %arg7: memref<8x128xf32, #tpu.memory_space<vmem>>, %arg8: memref<8x128xf32, #tpu.memory_space<vmem>>, %arg9: memref<1x7x8x128xf32, #tpu.memory_space<vmem>>) attributes {dimension_semantics = [#tpu.dimension_semantics<parallel>, #tpu.dimension_semantics<arbitrary>], iteration_bounds = array<i64: 1, 1>, scalar_prefetch = 0 : i64, scratch_operands = 0 : i64, tpu.core_type = #tpu.core_type<tc>, window_params = [{transform_indices = @transform_0, window_bounds = array<i64: 8, 128>}, {transform_indices = @transform_1, window_bounds = array<i64: 8, 128>}, {transform_indices = @transform_2, window_bounds = array<i64: 8, 128>}, {transform_indices = @transform_3, window_bounds = array<i64: 8, 128>}, {transform_indices = @transform_4, window_bounds = array<i64: 8, 128>}, {transform_indices = @transform_5, window_bounds = array<i64: 8, 128>}, {transform_indices = @transform_6, window_bounds = array<i64: 8, 128>}, {transform_indices = @transform_7, window_bounds = array<i64: 1, 7, 8, 128>}]} {
    %c0_i32 = arith.constant 0 : i32
    %0 = arith.cmpi eq, %arg1, %c0_i32 : i32
    %1 = arith.extui %0 : i1 to i32
    %c0_i32_0 = arith.constant 0 : i32
    %2 = arith.cmpi ne, %1, %c0_i32_0 : i32
    scf.if %2 {
      %cst_70 = arith.constant 0.000000e+00 : f32
      %74 = vector.broadcast %cst_70 : f32 to vector<1x7x8x128xf32>
      %c0_71 = arith.constant 0 : index
      %c0_72 = arith.constant 0 : index
      %c0_73 = arith.constant 0 : index
      %c0_74 = arith.constant 0 : index
      %75 = vector.load %arg9[%c0_71, %c0_72, %c0_73, %c0_74] : memref<1x7x8x128xf32, #tpu.memory_space<vmem>>, vector<1x7x8x128xf32>
      tpu.vector_store %arg9[%c0_71, %c0_72, %c0_73, %c0_74], %74 {strides = array<i32>} : memref<1x7x8x128xf32, #tpu.memory_space<vmem>>, vector<1x7x8x128xf32>,
    } else {
    }
    %c0 = arith.constant 0 : index
    %c0_1 = arith.constant 0 : index
    %3 = vector.load %arg2[%c0, %c0_1] : memref<8x128xf32, #tpu.memory_space<vmem>>, vector<8x128xf32>
    %c0_2 = arith.constant 0 : index
    %c0_3 = arith.constant 0 : index
    %4 = vector.load %arg3[%c0_2, %c0_3] : memref<8x128xf32, #tpu.memory_space<vmem>>, vector<8x128xf32>
    %c0_4 = arith.constant 0 : index
    %c0_5 = arith.constant 0 : index
    %5 = vector.load %arg4[%c0_4, %c0_5] : memref<8x128xf32, #tpu.memory_space<vmem>>, vector<8x128xf32>
    %c0_6 = arith.constant 0 : index
    %c0_7 = arith.constant 0 : index
    %6 = vector.load %arg5[%c0_6, %c0_7] : memref<8x128xf32, #tpu.memory_space<vmem>>, vector<8x128xf32>
    %c0_8 = arith.constant 0 : index
    %c0_9 = arith.constant 0 : index
    %7 = vector.load %arg6[%c0_8, %c0_9] : memref<8x128xf32, #tpu.memory_space<vmem>>, vector<8x128xf32>
    %c0_10 = arith.constant 0 : index
    %c0_11 = arith.constant 0 : index
    %8 = vector.load %arg7[%c0_10, %c0_11] : memref<8x128xf32, #tpu.memory_space<vmem>>, vector<8x128xf32>
    %c0_12 = arith.constant 0 : index
    %c0_13 = arith.constant 0 : index
    %9 = vector.load %arg8[%c0_12, %c0_13] : memref<8x128xf32, #tpu.memory_space<vmem>>, vector<8x128xf32>
    %10 = arith.mulf %3, %7 : vector<8x128xf32>
    %11 = arith.mulf %4, %7 : vector<8x128xf32>
    %12 = arith.mulf %10, %6 : vector<8x128xf32>
    %13 = arith.mulf %6, %7 : vector<8x128xf32>
    %14 = arith.mulf %11, %6 : vector<8x128xf32>
    %15 = arith.subf %5, %8 : vector<8x128xf32>
    %16 = math.absf %15 : vector<8x128xf32>
    %17 = arith.mulf %16, %9 : vector<8x128xf32>
    %c0_14 = arith.constant 0 : index
    %c0_15 = arith.constant 0 : index
    %c0_16 = arith.constant 0 : index
    %c0_17 = arith.constant 0 : index
    %18 = vector.load %arg9[%c0_14, %c0_15, %c0_16, %c0_17] : memref<1x7x8x128xf32, #tpu.memory_space<vmem>>, vector<1x1x8x128xf32>
    %19 = vector.shape_cast %18 : vector<1x1x8x128xf32> to vector<8x128xf32>
    %20 = vector.shape_cast %12 : vector<8x128xf32> to vector<1x8x128xf32>
    %cst = arith.constant dense<0.000000e+00> : vector<8x128xf32>
    %21 = vector.multi_reduction <add>, %20, %cst [0] : vector<1x8x128xf32> to vector<8x128xf32>
    %22 = arith.addf %19, %21 : vector<8x128xf32>
    %c0_18 = arith.constant 0 : index
    %c0_19 = arith.constant 0 : index
    %c0_20 = arith.constant 0 : index
    %c0_21 = arith.constant 0 : index
    %23 = vector.load %arg9[%c0_18, %c0_19, %c0_20, %c0_21] : memref<1x7x8x128xf32, #tpu.memory_space<vmem>>, vector<1x1x8x128xf32>
    %24 = vector.shape_cast %23 : vector<1x1x8x128xf32> to vector<8x128xf32>
    %25 = vector.shape_cast %22 : vector<8x128xf32> to vector<1x1x8x128xf32>
    tpu.vector_store %arg9[%c0_18, %c0_19, %c0_20, %c0_21], %25 {strides = array<i32>} : memref<1x7x8x128xf32, #tpu.memory_space<vmem>>, vector<1x1x8x128xf32>,
    %c0_22 = arith.constant 0 : index
    %c1 = arith.constant 1 : index
    %c0_23 = arith.constant 0 : index
    %c0_24 = arith.constant 0 : index
    %26 = vector.load %arg9[%c0_22, %c1, %c0_23, %c0_24] : memref<1x7x8x128xf32, #tpu.memory_space<vmem>>, vector<1x1x8x128xf32>
    %27 = vector.shape_cast %26 : vector<1x1x8x128xf32> to vector<8x128xf32>
    %28 = vector.shape_cast %10 : vector<8x128xf32> to vector<1x8x128xf32>
    %cst_25 = arith.constant dense<0.000000e+00> : vector<8x128xf32>
    %29 = vector.multi_reduction <add>, %28, %cst_25 [0] : vector<1x8x128xf32> to vector<8x128xf32>
    %30 = arith.addf %27, %29 : vector<8x128xf32>
    %c0_26 = arith.constant 0 : index
    %c1_27 = arith.constant 1 : index
    %c0_28 = arith.constant 0 : index
    %c0_29 = arith.constant 0 : index
    %31 = vector.load %arg9[%c0_26, %c1_27, %c0_28, %c0_29] : memref<1x7x8x128xf32, #tpu.memory_space<vmem>>, vector<1x1x8x128xf32>
    %32 = vector.shape_cast %31 : vector<1x1x8x128xf32> to vector<8x128xf32>
    %33 = vector.shape_cast %30 : vector<8x128xf32> to vector<1x1x8x128xf32>
    tpu.vector_store %arg9[%c0_26, %c1_27, %c0_28, %c0_29], %33 {strides = array<i32>} : memref<1x7x8x128xf32, #tpu.memory_space<vmem>>, vector<1x1x8x128xf32>,
    %c0_30 = arith.constant 0 : index
    %c2 = arith.constant 2 : index
    %c0_31 = arith.constant 0 : index
    %c0_32 = arith.constant 0 : index
    %34 = vector.load %arg9[%c0_30, %c2, %c0_31, %c0_32] : memref<1x7x8x128xf32, #tpu.memory_space<vmem>>, vector<1x1x8x128xf32>
    %35 = vector.shape_cast %34 : vector<1x1x8x128xf32> to vector<8x128xf32>
    %36 = vector.shape_cast %13 : vector<8x128xf32> to vector<1x8x128xf32>
    %cst_33 = arith.constant dense<0.000000e+00> : vector<8x128xf32>
    %37 = vector.multi_reduction <add>, %36, %cst_33 [0] : vector<1x8x128xf32> to vector<8x128xf32>
    %38 = arith.addf %35, %37 : vector<8x128xf32>
    %c0_34 = arith.constant 0 : index
    %c2_35 = arith.constant 2 : index
    %c0_36 = arith.constant 0 : index
    %c0_37 = arith.constant 0 : index
    %39 = vector.load %arg9[%c0_34, %c2_35, %c0_36, %c0_37] : memref<1x7x8x128xf32, #tpu.memory_space<vmem>>, vector<1x1x8x128xf32>
    %40 = vector.shape_cast %39 : vector<1x1x8x128xf32> to vector<8x128xf32>
    %41 = vector.shape_cast %38 : vector<8x128xf32> to vector<1x1x8x128xf32>
    tpu.vector_store %arg9[%c0_34, %c2_35, %c0_36, %c0_37], %41 {strides = array<i32>} : memref<1x7x8x128xf32, #tpu.memory_space<vmem>>, vector<1x1x8x128xf32>,
    %c0_38 = arith.constant 0 : index
    %c3 = arith.constant 3 : index
    %c0_39 = arith.constant 0 : index
    %c0_40 = arith.constant 0 : index
    %42 = vector.load %arg9[%c0_38, %c3, %c0_39, %c0_40] : memref<1x7x8x128xf32, #tpu.memory_space<vmem>>, vector<1x1x8x128xf32>
    %43 = vector.shape_cast %42 : vector<1x1x8x128xf32> to vector<8x128xf32>
    %44 = vector.shape_cast %14 : vector<8x128xf32> to vector<1x8x128xf32>
    %cst_41 = arith.constant dense<0.000000e+00> : vector<8x128xf32>
    %45 = vector.multi_reduction <add>, %44, %cst_41 [0] : vector<1x8x128xf32> to vector<8x128xf32>
    %46 = arith.addf %43, %45 : vector<8x128xf32>
    %c0_42 = arith.constant 0 : index
    %c3_43 = arith.constant 3 : index
    %c0_44 = arith.constant 0 : index
    %c0_45 = arith.constant 0 : index
    %47 = vector.load %arg9[%c0_42, %c3_43, %c0_44, %c0_45] : memref<1x7x8x128xf32, #tpu.memory_space<vmem>>, vector<1x1x8x128xf32>
    %48 = vector.shape_cast %47 : vector<1x1x8x128xf32> to vector<8x128xf32>
    %49 = vector.shape_cast %46 : vector<8x128xf32> to vector<1x1x8x128xf32>
    tpu.vector_store %arg9[%c0_42, %c3_43, %c0_44, %c0_45], %49 {strides = array<i32>} : memref<1x7x8x128xf32, #tpu.memory_space<vmem>>, vector<1x1x8x128xf32>,
    %c0_46 = arith.constant 0 : index
    %c4 = arith.constant 4 : index
    %c0_47 = arith.constant 0 : index
    %c0_48 = arith.constant 0 : index
    %50 = vector.load %arg9[%c0_46, %c4, %c0_47, %c0_48] : memref<1x7x8x128xf32, #tpu.memory_space<vmem>>, vector<1x1x8x128xf32>
    %51 = vector.shape_cast %50 : vector<1x1x8x128xf32> to vector<8x128xf32>
    %52 = vector.shape_cast %11 : vector<8x128xf32> to vector<1x8x128xf32>
    %cst_49 = arith.constant dense<0.000000e+00> : vector<8x128xf32>
    %53 = vector.multi_reduction <add>, %52, %cst_49 [0] : vector<1x8x128xf32> to vector<8x128xf32>
    %54 = arith.addf %51, %53 : vector<8x128xf32>
    %c0_50 = arith.constant 0 : index
    %c4_51 = arith.constant 4 : index
    %c0_52 = arith.constant 0 : index
    %c0_53 = arith.constant 0 : index
    %55 = vector.load %arg9[%c0_50, %c4_51, %c0_52, %c0_53] : memref<1x7x8x128xf32, #tpu.memory_space<vmem>>, vector<1x1x8x128xf32>
    %56 = vector.shape_cast %55 : vector<1x1x8x128xf32> to vector<8x128xf32>
    %57 = vector.shape_cast %54 : vector<8x128xf32> to vector<1x1x8x128xf32>
    tpu.vector_store %arg9[%c0_50, %c4_51, %c0_52, %c0_53], %57 {strides = array<i32>} : memref<1x7x8x128xf32, #tpu.memory_space<vmem>>, vector<1x1x8x128xf32>,
    %c0_54 = arith.constant 0 : index
    %c5 = arith.constant 5 : index
    %c0_55 = arith.constant 0 : index
    %c0_56 = arith.constant 0 : index
    %58 = vector.load %arg9[%c0_54, %c5, %c0_55, %c0_56] : memref<1x7x8x128xf32, #tpu.memory_space<vmem>>, vector<1x1x8x128xf32>
    %59 = vector.shape_cast %58 : vector<1x1x8x128xf32> to vector<8x128xf32>
    %60 = vector.shape_cast %17 : vector<8x128xf32> to vector<1x8x128xf32>
    %cst_57 = arith.constant dense<0.000000e+00> : vector<8x128xf32>
    %61 = vector.multi_reduction <add>, %60, %cst_57 [0] : vector<1x8x128xf32> to vector<8x128xf32>
    %62 = arith.addf %59, %61 : vector<8x128xf32>
    %c0_58 = arith.constant 0 : index
    %c5_59 = arith.constant 5 : index
    %c0_60 = arith.constant 0 : index
    %c0_61 = arith.constant 0 : index
    %63 = vector.load %arg9[%c0_58, %c5_59, %c0_60, %c0_61] : memref<1x7x8x128xf32, #tpu.memory_space<vmem>>, vector<1x1x8x128xf32>
    %64 = vector.shape_cast %63 : vector<1x1x8x128xf32> to vector<8x128xf32>
    %65 = vector.shape_cast %62 : vector<8x128xf32> to vector<1x1x8x128xf32>
    tpu.vector_store %arg9[%c0_58, %c5_59, %c0_60, %c0_61], %65 {strides = array<i32>} : memref<1x7x8x128xf32, #tpu.memory_space<vmem>>, vector<1x1x8x128xf32>,
    %c0_62 = arith.constant 0 : index
    %c6 = arith.constant 6 : index
    %c0_63 = arith.constant 0 : index
    %c0_64 = arith.constant 0 : index
    %66 = vector.load %arg9[%c0_62, %c6, %c0_63, %c0_64] : memref<1x7x8x128xf32, #tpu.memory_space<vmem>>, vector<1x1x8x128xf32>
    %67 = vector.shape_cast %66 : vector<1x1x8x128xf32> to vector<8x128xf32>
    %68 = vector.shape_cast %9 : vector<8x128xf32> to vector<1x8x128xf32>
    %cst_65 = arith.constant dense<0.000000e+00> : vector<8x128xf32>
    %69 = vector.multi_reduction <add>, %68, %cst_65 [0] : vector<1x8x128xf32> to vector<8x128xf32>
    %70 = arith.addf %67, %69 : vector<8x128xf32>
    %c0_66 = arith.constant 0 : index
    %c6_67 = arith.constant 6 : index
    %c0_68 = arith.constant 0 : index
    %c0_69 = arith.constant 0 : index
    %71 = vector.load %arg9[%c0_66, %c6_67, %c0_68, %c0_69] : memref<1x7x8x128xf32, #tpu.memory_space<vmem>>, vector<1x1x8x128xf32>
    %72 = vector.shape_cast %71 : vector<1x1x8x128xf32> to vector<8x128xf32>
    %73 = vector.shape_cast %70 : vector<8x128xf32> to vector<1x1x8x128xf32>
    tpu.vector_store %arg9[%c0_66, %c6_67, %c0_68, %c0_69], %73 {strides = array<i32>} : memref<1x7x8x128xf32, #tpu.memory_space<vmem>>, vector<1x1x8x128xf32>,
    return
  }
  func.func @transform_0(%arg0: i32, %arg1: i32) -> (i32, i32) {
    %c1_i32 = arith.constant 1 : i32
    %0 = arith.muli %arg0, %c1_i32 : i32
    %1 = arith.addi %0, %arg1 : i32
    %c0_i32 = arith.constant 0 : i32
    %2 = arith.minsi %1, %c0_i32 : i32
    %c0_i32_0 = arith.constant 0 : i32
    %c0_i32_1 = arith.constant 0 : i32
    return %2, %c0_i32_0 : i32, i32
  }
  func.func @transform_1(%arg0: i32, %arg1: i32) -> (i32, i32) {
    %c1_i32 = arith.constant 1 : i32
    %0 = arith.muli %arg0, %c1_i32 : i32
    %1 = arith.addi %0, %arg1 : i32
    %c0_i32 = arith.constant 0 : i32
    %2 = arith.minsi %1, %c0_i32 : i32
    %c0_i32_0 = arith.constant 0 : i32
    %c0_i32_1 = arith.constant 0 : i32
    return %2, %c0_i32_0 : i32, i32
  }
  func.func @transform_2(%arg0: i32, %arg1: i32) -> (i32, i32) {
    %c1_i32 = arith.constant 1 : i32
    %0 = arith.muli %arg0, %c1_i32 : i32
    %1 = arith.addi %0, %arg1 : i32
    %c0_i32 = arith.constant 0 : i32
    %2 = arith.minsi %1, %c0_i32 : i32
    %c0_i32_0 = arith.constant 0 : i32
    %c0_i32_1 = arith.constant 0 : i32
    return %2, %c0_i32_0 : i32, i32
  }
  func.func @transform_3(%arg0: i32, %arg1: i32) -> (i32, i32) {
    %c1_i32 = arith.constant 1 : i32
    %0 = arith.muli %arg0, %c1_i32 : i32
    %1 = arith.addi %0, %arg1 : i32
    %c0_i32 = arith.constant 0 : i32
    %2 = arith.minsi %1, %c0_i32 : i32
    %c0_i32_0 = arith.constant 0 : i32
    %c0_i32_1 = arith.constant 0 : i32
    return %2, %c0_i32_0 : i32, i32
  }
  func.func @transform_4(%arg0: i32, %arg1: i32) -> (i32, i32) {
    %c1_i32 = arith.constant 1 : i32
    %0 = arith.muli %arg0, %c1_i32 : i32
    %1 = arith.addi %0, %arg1 : i32
    %c0_i32 = arith.constant 0 : i32
    %2 = arith.minsi %1, %c0_i32 : i32
    %c0_i32_0 = arith.constant 0 : i32
    %c0_i32_1 = arith.constant 0 : i32
    return %2, %c0_i32_0 : i32, i32
  }
  func.func @transform_5(%arg0: i32, %arg1: i32) -> (i32, i32) {
    %c1_i32 = arith.constant 1 : i32
    %0 = arith.muli %arg0, %c1_i32 : i32
    %1 = arith.addi %0, %arg1 : i32
    %c0_i32 = arith.constant 0 : i32
    %2 = arith.minsi %1, %c0_i32 : i32
    %c0_i32_0 = arith.constant 0 : i32
    %c0_i32_1 = arith.constant 0 : i32
    return %2, %c0_i32_0 : i32, i32
  }
  func.func @transform_6(%arg0: i32, %arg1: i32) -> (i32, i32) {
    %c1_i32 = arith.constant 1 : i32
    %0 = arith.muli %arg0, %c1_i32 : i32
    %1 = arith.addi %0, %arg1 : i32
    %c0_i32 = arith.constant 0 : i32
    %2 = arith.minsi %1, %c0_i32 : i32
    %c0_i32_0 = arith.constant 0 : i32
    %c0_i32_1 = arith.constant 0 : i32
    return %2, %c0_i32_0 : i32, i32
  }
  func.func @transform_7(%arg0: i32, %arg1: i32) -> (i32, i32, i32, i32) {
    %c0_i32 = arith.constant 0 : i32
    %c0_i32_0 = arith.constant 0 : i32
    %c0_i32_1 = arith.constant 0 : i32
    %c0_i32_2 = arith.constant 0 : i32
    return %arg0, %c0_i32, %c0_i32_0, %c0_i32_1 : i32, i32, i32, i32
  }
}

</mosaic_0001>

<llo_original>
// kernel: tpu_custom_call.1
$region0: #{tpu_custom_call.1}
  #allocation0 [shape = 'u32[]', space=smem, size = 0x4, offset = 0x4, fixed_abs, tag = 'smem constant byte address 0x4 - core index']
  #allocation1 [shape = 'u32[144,128]{1,0:T(1,128)}', space=vmem, size = 0x12000, scoped, tag = 'internal scratch']
  %s0 = inlined_call_operand.hbm [shape: f32[8,128], index: 0, kind: input, shape index: {}]
  %s1 = inlined_call_operand.hbm [shape: f32[8,128], index: 1, kind: input, shape index: {}]
  %s2 = inlined_call_operand.hbm [shape: f32[8,128], index: 2, kind: input, shape index: {}]
  %s3 = inlined_call_operand.vmem [shape: f32[8,128], index: 3, kind: input, shape index: {}]
  %s4 = inlined_call_operand.hbm [shape: f32[8,128], index: 4, kind: input, shape index: {}]
  %s5 = inlined_call_operand.vmem [shape: f32[8,128], index: 5, kind: input, shape index: {}]
  %s6 = inlined_call_operand.hbm [shape: f32[8,128], index: 6, kind: input, shape index: {}]
  %s7 = inlined_call_operand.hbm [shape: f32[1,7,8,128], index: 7, kind: output, shape index: {}]
  %s8 = sld [smem:[#allocation0]]
  $region62: #{tpu_custom_call.1} parent=0
    _
  %s10 = ssub.s32 1, %s8
  %s11 = scalar_select 0, %s10, %s8
  $region1: #{tpu_custom_call.1} parent=0
    #allocation2 [shape = 'u8[4096]{0}', space=vmem, size = 0x1000, scoped, tag = 'input window, operand 0, single buffered']
    #allocation3 [shape = 's32[1]{0}', space=sflag, size = 0x4, scoped, tag = 'scoped memory for tpu_custom_call.1']
    #allocation4 [shape = 's32[1]{0}', space=sflag, size = 0x4, scoped, tag = 'scoped memory for tpu_custom_call.1']
    #allocation5 [shape = 'u8[4096]{0}', space=vmem, size = 0x1000, scoped, tag = 'input window, operand 1, single buffered']
    #allocation6 [shape = 's32[1]{0}', space=sflag, size = 0x4, scoped, tag = 'scoped memory for tpu_custom_call.1']
    #allocation7 [shape = 'u8[4096]{0}', space=vmem, size = 0x1000, scoped, tag = 'input window, operand 2, single buffered']
    #allocation8 [shape = 'u8[4096]{0}', space=vmem, size = 0x1000, scoped, tag = 'input window, operand 4, single buffered']
    #allocation9 [shape = 's32[1]{0}', space=sflag, size = 0x4, scoped, tag = 'scoped memory for tpu_custom_call.1']
    #allocation10 [shape = 'u8[4096]{0}', space=vmem, size = 0x1000, scoped, tag = 'input window, operand 6, single buffered']
    #allocation11 [shape = 'u8[28672]{0}', space=vmem, size = 0x7000, scoped, tag = 'output window, operand 0, single buffered']
    %12 = vsyncpa [#allocation3], 0
    %13 = vsyncpa [#allocation6], 0
    %14 = vsyncpa [#allocation9], 0
    %15 = vsyncpa [#allocation4], 0
    // Predicated region
    $region2: #{tpu_custom_call.1} parent=1 // pred_check
      _
    $region3: #{tpu_custom_call.1} parent=1 // pred_check_branch
      %17 = sbr.rel (0) target = $region5
    $region4: #{tpu_custom_call.1} parent=1 // pred_region
      %s18 = sadd.s32 0, 0
      %p19 = scmp.lt.s32.totalorder %s18, 0
      %s20 = scalar_select %p19, %s18, 0
      %s22 = ssub.s32 128, 128
      %23 = vsyncadd [#allocation3], %s22
      %s24 = smul.addr %s20, 128
      %s25 = scalar_lea.hbm %s0, %s24
      %s27 = sshll.u32 [#allocation2], 4
      %s28 = int_to_ptr.vmem [resolvable:$true] %s27
      %30 = dma.hbm_to_vmem [thread:$0]  %s25, 128, %s28, [#allocation3]
    $region5: #{tpu_custom_call.1} parent=1 // pred_fallthru
      _
    // Predicated region
    $region6: #{tpu_custom_call.1} parent=1 // pred_check
      _
    $region7: #{tpu_custom_call.1} parent=1 // pred_check_branch
      %32 = sbr.rel (0) target = $region9
    $region8: #{tpu_custom_call.1} parent=1 // pred_region
      %s33 = sadd.s32 0, 0
      %p34 = scmp.lt.s32.totalorder %s33, 0
      %s35 = scalar_select %p34, %s33, 0
      %s37 = ssub.s32 128, 128
      %38 = vsyncadd [#allocation6], %s37
      %s39 = smul.addr %s35, 128
      %s40 = scalar_lea.hbm %s1, %s39
      %s42 = sshll.u32 [#allocation5], 4
      %s43 = int_to_ptr.vmem [resolvable:$true] %s42
      %45 = dma.hbm_to_vmem [thread:$0]  %s40, 128, %s43, [#allocation6]
    $region9: #{tpu_custom_call.1} parent=1 // pred_fallthru
      _
    // Predicated region
    $region10: #{tpu_custom_call.1} parent=1 // pred_check
      _
    $region11: #{tpu_custom_call.1} parent=1 // pred_check_branch
      %47 = sbr.rel (0) target = $region13
    $region12: #{tpu_custom_call.1} parent=1 // pred_region
      %s48 = sadd.s32 0, 0
      %p49 = scmp.lt.s32.totalorder %s48, 0
      %s50 = scalar_select %p49, %s48, 0
      %s52 = ssub.s32 128, 128
      %53 = vsyncadd [#allocation6], %s52
      %s54 = smul.addr %s50, 128
      %s55 = scalar_lea.hbm %s2, %s54
      %s57 = sshll.u32 [#allocation7], 4
      %s58 = int_to_ptr.vmem [resolvable:$true] %s57
      %60 = dma.hbm_to_vmem [thread:$0]  %s55, 128, %s58, [#allocation6]
    $region13: #{tpu_custom_call.1} parent=1 // pred_fallthru
      _
    // Predicated region
    $region14: #{tpu_custom_call.1} parent=1 // pred_check
      _
    $region15: #{tpu_custom_call.1} parent=1 // pred_check_branch
      %62 = sbr.rel (0) target = $region17
    $region16: #{tpu_custom_call.1} parent=1 // pred_region
      %s63 = sadd.s32 0, 0
      %p64 = scmp.lt.s32.totalorder %s63, 0
      %s65 = scalar_select %p64, %s63, 0
      %p66 = scmp.lt.s32.totalorder %s65, 0
      %s67 = scalar_select %p66, %s65, 0
      %s68 = smul.addr %s67, 8
      %s69 = scalar_lea.vmem %s3, %s68
      %s70 = sadd.s32 0, 0
      %p71 = scmp.lt.s32.totalorder %s70, 0
      %s72 = scalar_select %p71, %s70, 0
    $region17: #{tpu_custom_call.1} parent=1 // pred_fallthru
      _
    // Predicated region
    $region18: #{tpu_custom_call.1} parent=1 // pred_check
      _
    $region19: #{tpu_custom_call.1} parent=1 // pred_check_branch
      %74 = sbr.rel (0) target = $region21
    $region20: #{tpu_custom_call.1} parent=1 // pred_region
      %s75 = sadd.s32 0, 0
      %p76 = scmp.lt.s32.totalorder %s75, 0
      %s77 = scalar_select %p76, %s75, 0
      %s79 = ssub.s32 128, 128
      %80 = vsyncadd [#allocation9], %s79
      %s81 = smul.addr %s77, 128
      %s82 = scalar_lea.hbm %s4, %s81
      %s84 = sshll.u32 [#allocation8], 4
      %s85 = int_to_ptr.vmem [resolvable:$true] %s84
      %87 = dma.hbm_to_vmem [thread:$0]  %s82, 128, %s85, [#allocation9]
    $region21: #{tpu_custom_call.1} parent=1 // pred_fallthru
      _
    // Predicated region
    $region22: #{tpu_custom_call.1} parent=1 // pred_check
      _
    $region23: #{tpu_custom_call.1} parent=1 // pred_check_branch
      %89 = sbr.rel (0) target = $region25
    $region24: #{tpu_custom_call.1} parent=1 // pred_region
      %s90 = sadd.s32 0, 0
      %p91 = scmp.lt.s32.totalorder %s90, 0
      %s92 = scalar_select %p91, %s90, 0
      %p93 = scmp.lt.s32.totalorder %s92, 0
      %s94 = scalar_select %p93, %s92, 0
      %s95 = smul.addr %s94, 8
      %s96 = scalar_lea.vmem %s5, %s95
      %s97 = sadd.s32 0, 0
      %p98 = scmp.lt.s32.totalorder %s97, 0
      %s99 = scalar_select %p98, %s97, 0
    $region25: #{tpu_custom_call.1} parent=1 // pred_fallthru
      _
    // Predicated region
    $region26: #{tpu_custom_call.1} parent=1 // pred_check
      _
    $region27: #{tpu_custom_call.1} parent=1 // pred_check_branch
      %101 = sbr.rel (0) target = $region29
    $region28: #{tpu_custom_call.1} parent=1 // pred_region
      %s102 = sadd.s32 0, 0
      %p103 = scmp.lt.s32.totalorder %s102, 0
      %s104 = scalar_select %p103, %s102, 0
      %s106 = ssub.s32 128, 128
      %107 = vsyncadd [#allocation9], %s106
      %s108 = smul.addr %s104, 128
      %s109 = scalar_lea.hbm %s6, %s108
      %s111 = sshll.u32 [#allocation10], 4
      %s112 = int_to_ptr.vmem [resolvable:$true] %s111
      %114 = dma.hbm_to_vmem [thread:$0]  %s109, 128, %s112, [#allocation9]
    $region29: #{tpu_custom_call.1} parent=1 // pred_fallthru
      _
    // Predicated region
    $region30: #{tpu_custom_call.1} parent=1 // pred_check
      _
    $region31: #{tpu_custom_call.1} parent=1 // pred_check_branch
      %116 = sbr.rel (0) target = $region33
    $region32: #{tpu_custom_call.1} parent=1 // pred_region
      %117 = dma.done [#allocation3], 128
    $region33: #{tpu_custom_call.1} parent=1 // pred_fallthru
      _
    // Predicated region
    $region34: #{tpu_custom_call.1} parent=1 // pred_check
      _
    $region35: #{tpu_custom_call.1} parent=1 // pred_check_branch
      %119 = sbr.rel (0) target = $region37
    $region36: #{tpu_custom_call.1} parent=1 // pred_region
      %120 = dma.done [#allocation6], 128
    $region37: #{tpu_custom_call.1} parent=1 // pred_fallthru
      _
    // Predicated region
    $region38: #{tpu_custom_call.1} parent=1 // pred_check
      _
    $region39: #{tpu_custom_call.1} parent=1 // pred_check_branch
      %122 = sbr.rel (0) target = $region41
    $region40: #{tpu_custom_call.1} parent=1 // pred_region
      %123 = dma.done [#allocation6], 128
    $region41: #{tpu_custom_call.1} parent=1 // pred_fallthru
      _
    // Predicated region
    $region42: #{tpu_custom_call.1} parent=1 // pred_check
      _
    $region43: #{tpu_custom_call.1} parent=1 // pred_check_branch
      %125 = sbr.rel (0) target = $region45
    $region44: #{tpu_custom_call.1} parent=1 // pred_region
      %126 = dma.done [#allocation9], 128
    $region45: #{tpu_custom_call.1} parent=1 // pred_fallthru
      _
    // Predicated region
    $region46: #{tpu_custom_call.1} parent=1 // pred_check
      _
    $region47: #{tpu_custom_call.1} parent=1 // pred_check_branch
      %128 = sbr.rel (0) target = $region49
    $region48: #{tpu_custom_call.1} parent=1 // pred_region
      %129 = dma.done [#allocation9], 128
    $region49: #{tpu_custom_call.1} parent=1 // pred_fallthru
      _
    %s130 = sadd.s32 0, 0
    %p131 = scmp.lt.s32.totalorder %s130, 0
    %s132 = scalar_select %p131, %s130, 0
    %p133 = scmp.lt.s32.totalorder %s132, 0
    %s134 = scalar_select %p133, %s132, 0
    %s135 = smul.addr %s134, 8
    %s136 = scalar_lea.vmem %s3, %s135
    %s137 = sadd.s32 0, 0
    %p138 = scmp.lt.s32.totalorder %s137, 0
    %s139 = scalar_select %p138, %s137, 0
    %p140 = scmp.lt.s32.totalorder %s139, 0
    %s141 = scalar_select %p140, %s139, 0
    %s142 = smul.addr %s141, 8
    %s143 = scalar_lea.vmem %s5, %s142
    %s144 = sadd.s32 0, 0
    %p145 = scmp.lt.s32.totalorder %s144, 0
    %s146 = scalar_select %p145, %s144, 0
    %s147 = sadd.s32 0, 0
    %p148 = scmp.lt.s32.totalorder %s147, 0
    %s149 = scalar_select %p148, %s147, 0
    %s150 = sadd.s32 0, 0
    %p151 = scmp.lt.s32.totalorder %s150, 0
    %s152 = scalar_select %p151, %s150, 0
    %s153 = sadd.s32 0, 0
    %p154 = scmp.lt.s32.totalorder %s153, 0
    %s155 = scalar_select %p154, %s153, 0
    %p156 = scmp.lt.s32.totalorder %s155, 0
    %s157 = scalar_select %p156, %s155, 0
    %s158 = smul.addr %s157, 8
    %s159 = scalar_lea.vmem %s3, %s158
    %s160 = sadd.s32 0, 0
    %p161 = scmp.lt.s32.totalorder %s160, 0
    %s162 = scalar_select %p161, %s160, 0
    %s163 = sadd.s32 0, 0
    %p164 = scmp.lt.s32.totalorder %s163, 0
    %s165 = scalar_select %p164, %s163, 0
    %s166 = sadd.s32 0, 0
    %p167 = scmp.lt.s32.totalorder %s166, 0
    %s168 = scalar_select %p167, %s166, 0
    %p169 = scmp.lt.s32.totalorder %s168, 0
    %s170 = scalar_select %p169, %s168, 0
    %s171 = smul.addr %s170, 8
    %s172 = scalar_lea.vmem %s5, %s171
    %s173 = sadd.s32 0, 0
    %p174 = scmp.lt.s32.totalorder %s173, 0
    %s175 = scalar_select %p174, %s173, 0
    %s176 = sadd.s32 0, 0
    %p177 = scmp.lt.s32.totalorder %s176, 0
    %s178 = scalar_select %p177, %s176, 0
    %p179 = scmp.eq.s32.totalorder 0, 0
    // Predicated region
    $region50: #{tpu_custom_call.1} parent=1 // pred_check
      %p180 = pneg %p179
    $region51: #{tpu_custom_call.1} parent=1 // pred_check_branch
      %182 = sbr.rel (%p180) target = $region53
    $region52: #{tpu_custom_call.1} parent=1 // pred_region
      %183 = vst [vmem:[#allocation11] sm:$0xff] 0.0
      %184 = vst [vmem:[#allocation11 + $0x8] sm:$0xff] 0.0
      %185 = vst [vmem:[#allocation11 + $0x10] sm:$0xff] 0.0
      %186 = vst [vmem:[#allocation11 + $0x18] sm:$0xff] 0.0
      %187 = vst [vmem:[#allocation11 + $0x20] sm:$0xff] 0.0
      %188 = vst [vmem:[#allocation11 + $0x28] sm:$0xff] 0.0
      %189 = vst [vmem:[#allocation11 + $0x30] sm:$0xff] 0.0
    $region53: #{tpu_custom_call.1} parent=1 // pred_fallthru
      _
    %v190 = vld [vmem:[#allocation2] sm:$0xff]
    %v191 = vld [vmem:[#allocation5] sm:$0xff]
    %v192 = vld [vmem:[#allocation7] sm:$0xff]
    %v193 = vld [vmem:[%s159] sm:$0xff]
    %v194 = vld [vmem:[#allocation8] sm:$0xff]
    %v195 = vld [vmem:[%s172] sm:$0xff]
    %v196 = vld [vmem:[#allocation10] sm:$0xff]
    %v197 = vmul.f32 %v190, %v194
    %v198 = vmul.f32 %v191, %v194
    %v199 = vmul.f32 %v197, %v193
    %v200 = vmul.f32 %v193, %v194
    %v201 = vmul.f32 %v198, %v193
    %v202 = vsub.f32 %v192, %v195
    %v203 = vand.u32 2147483647, %v202
    %v204 = vmul.f32 %v203, %v196
    %v205 = vld [vmem:[#allocation11] sm:$0xff]
    %v206 = vadd.f32 %v199, 0.0
    %v207 = vadd.f32 %v205, %v206
    %208 = vst [vmem:[#allocation11] sm:$0xff] %v207
    %s209 = scalar_lea.vmem [#allocation11], 8
    %v210 = vld [vmem:[%s209] sm:$0xff]
    %v211 = vadd.f32 %v197, 0.0
    %v212 = vadd.f32 %v210, %v211
    %213 = vst [vmem:[%s209] sm:$0xff] %v212
    %s214 = scalar_lea.vmem [#allocation11], 16
    %v215 = vld [vmem:[%s214] sm:$0xff]
    %v216 = vadd.f32 %v200, 0.0
    %v217 = vadd.f32 %v215, %v216
    %218 = vst [vmem:[%s214] sm:$0xff] %v217
    %s219 = scalar_lea.vmem [#allocation11], 24
    %v220 = vld [vmem:[%s219] sm:$0xff]
    %v221 = vadd.f32 %v201, 0.0
    %v222 = vadd.f32 %v220, %v221
    %223 = vst [vmem:[%s219] sm:$0xff] %v222
    %s224 = scalar_lea.vmem [#allocation11], 32
    %v225 = vld [vmem:[%s224] sm:$0xff]
    %v226 = vadd.f32 %v198, 0.0
    %v227 = vadd.f32 %v225, %v226
    %228 = vst [vmem:[%s224] sm:$0xff] %v227
    %s229 = scalar_lea.vmem [#allocation11], 40
    %v230 = vld [vmem:[%s229] sm:$0xff]
    %v231 = vadd.f32 %v204, 0.0
    %v232 = vadd.f32 %v230, %v231
    %233 = vst [vmem:[%s229] sm:$0xff] %v232
    %s234 = scalar_lea.vmem [#allocation11], 48
    %v235 = vld [vmem:[%s234] sm:$0xff]
    %v236 = vadd.f32 %v196, 0.0
    %v237 = vadd.f32 %v235, %v236
    %238 = vst [vmem:[%s234] sm:$0xff] %v237
    // Predicated region
    $region54: #{tpu_custom_call.1} parent=1 // pred_check
      _
    $region55: #{tpu_custom_call.1} parent=1 // pred_check_branch
      %240 = sbr.rel (0) target = $region57
    $region56: #{tpu_custom_call.1} parent=1 // pred_region
      %s242 = ssub.s32 896, 896
      %243 = vsyncadd [#allocation4], %s242
      %s244 = sshll.u32 [#allocation11], 4
      %s245 = int_to_ptr.vmem [resolvable:$true] %s244
      %250 = dma.vmem_to_hbm [thread:$0]  %s245, 896, %s7, [#allocation4], 128, 128, 8
    $region57: #{tpu_custom_call.1} parent=1 // pred_fallthru
      _
    // Predicated region
    $region58: #{tpu_custom_call.1} parent=1 // pred_check
      _
    $region59: #{tpu_custom_call.1} parent=1 // pred_check_branch
      %252 = sbr.rel (0) target = $region61
    $region60: #{tpu_custom_call.1} parent=1 // pred_region
      %253 = dma.done [#allocation4], 896
    $region61: #{tpu_custom_call.1} parent=1 // pred_fallthru
      _
    %254 = vsyncpa [#allocation3], 1
    %255 = vsyncpa [#allocation6], 1
    %256 = vsyncpa [#allocation9], 1
    %257 = vsyncpa [#allocation4], 1

</llo_original>
